<compile_context>
chip_gen: v7x
topology: tpu7x:2x2x1
jax: 0.10.0
libtpu: 0.0.40
codegen_flags: <defaults>
</compile_context>

<pallas_src>
import math

import jax
import jax.numpy as jnp
from jax.experimental import pallas as pl
from jax.experimental.pallas import tpu as pltpu


def _actnorm_kernel(x_ref, scale_ref, mu_ref, z_ref):
    # Pure streaming elementwise op: per-channel scale + shift.
    # scale_ref / mu_ref are (1, L) resident blocks; broadcast over rows.
    z_ref[...] = x_ref[...] * scale_ref[...] + mu_ref[...]


def _cdiv(a, b):
    return -(-a // b)


def _round_up(a, b):
    return _cdiv(a, b) * b


def _pick_tile_budget_bytes():
    """Per-generation x-tile budget (double-buffered x+z => ~4x this in VMEM)."""
    kind = ""
    try:
        kind = jax.devices()[0].device_kind.lower()
    except Exception:  # pragma: no cover - defensive; fall through to default
        pass
    if "v7" in kind:
        # 4 * 9 MiB = 36 MiB, well under v7x's 64 MiB physical VMEM.
        return 9 * 1024 * 1024
    if "v6" in kind:
        # 4 * 6.5 MiB = 26 MiB, fits v6e's 32 MiB default scoped budget.
        return 6 * 1024 * 1024 + 512 * 1024
    # v5e / unknown: 4 * 3.5 MiB = 14 MiB fits the 16 MiB default scoped budget.
    return 3 * 1024 * 1024 + 512 * 1024


def _sublane_pack(dtype):
    # Sub-32-bit dtypes pack along sublanes: min useful row granularity.
    return {1: 32, 2: 16, 4: 8}.get(jnp.dtype(dtype).itemsize, 8)


def actnorm1_forward(x, mu, log_sigma, *, target_tile_bytes=None):
    """ActNorm1.forward.

    Args:
      x:         [..., dim]  (channels-last), any float dtype
      mu:        f32[dim]
      log_sigma: f32[dim]

    Returns:
      (z, log_det) with z.shape == x.shape (dtype of x) and log_det an f32 scalar.
    """
    orig_shape = x.shape
    dim = orig_shape[-1]
    assert mu.shape == (dim,) and log_sigma.shape == (dim,)

    # log_det and the per-channel scale are grid-invariant — compute once in XLA.
    log_det = jnp.sum(log_sigma)
    scale = jnp.exp(log_sigma)

    if target_tile_bytes is None:
        target_tile_bytes = _pick_tile_budget_bytes()

    itemsize = jnp.dtype(x.dtype).itemsize
    pack = _sublane_pack(x.dtype)
    total = math.prod(orig_shape)

    # Lane-dense layout: fold the flat stream so the last dim L is a multiple
    # of 128 (unmasked full-width stores).  L = lcm(dim, 128).
    L = (dim * 128) // math.gcd(dim, 128)
    # Pathological guard: if even the minimum (pack x L) tile would blow the
    # per-tile budget (huge dim not a multiple of 128), fall back to L = dim.
    if pack * L * itemsize > target_tile_bytes and dim % 128 != 0:
        L = dim  # correct but lane-sparse; only hit for very unusual dims

    reps = L // dim

    # Pad the flattened stream up to a multiple of L so the lane-dense fast
    # path applies to every shape; padding is sliced off afterwards.
    rows = _cdiv(total, L)
    padded = rows * L
    x_flat = x.reshape(-1)
    if padded != total:
        x_flat = jnp.pad(x_flat, (0, padded - total))
    x2d = x_flat.reshape(rows, L)

    # Keep kernel math in x.dtype (no f32 promotion for bf16 inputs, halves
    # the resident scale/mu vreg footprint).
    scale_w = jnp.tile(scale, reps).reshape(1, L).astype(x.dtype)
    mu_w = jnp.tile(mu, reps).reshape(1, L).astype(x.dtype)

    # Row tile: bounded by actual bytes first, then rounded to sublane packing.
    max_rows = (target_tile_bytes // (L * itemsize)) // pack * pack
    max_rows = max(max_rows, pack)

    if rows <= max_rows:
        row_tile = rows  # single block; last-two dims equal full array dims -> OK
    else:
        # Ensure at least two (roughly balanced) blocks so the "parallel" grid
        # axis can span both TensorCores on v7x.
        half = _round_up(_cdiv(rows, 2), pack)
        row_tile = min(max_rows, half)

    grid = (_cdiv(rows, row_tile),)

    # Explicit scoped-VMEM budget: 2x double-buffered x + 2x double-buffered z
    # plus small headroom for the resident scale/mu blocks and internals.
    tile_bytes = row_tile * L * itemsize
    vmem_limit = min(48 * 1024 * 1024, 4 * tile_bytes + 4 * 1024 * 1024)
    vmem_limit = max(vmem_limit, 16 * 1024 * 1024)

    z2d = pl.pallas_call(
        _actnorm_kernel,
        out_shape=jax.ShapeDtypeStruct((rows, L), x.dtype),
        grid_spec=pltpu.PrefetchScalarGridSpec(
            num_scalar_prefetch=0,
            grid=grid,
            in_specs=[
                pl.BlockSpec((row_tile, L), lambda i: (i, 0)),  # x tile (streamed)
                pl.BlockSpec((1, L), lambda i: (0, 0)),         # scale (resident)
                pl.BlockSpec((1, L), lambda i: (0, 0)),         # mu    (resident)
            ],
            out_specs=pl.BlockSpec((row_tile, L), lambda i: (i, 0)),
        ),
        compiler_params=pltpu.CompilerParams(
            # Every row tile is independent -> shard across TCs on v7x.
            dimension_semantics=("parallel",),
            vmem_limit_bytes=vmem_limit,
        ),
    )(x2d, scale_w, mu_w)

    z_flat = z2d.reshape(-1)
    if padded != total:
        z_flat = z_flat[:total]
    z = z_flat.reshape(orig_shape)
    return z, log_det


if __name__ == "__main__":
    # Deterministic small example. PyTorch initializes mu = zeros(dim),
    # log_sigma = zeros(dim); we use small nonzero values so the affine
    # transform is actually exercised.
    dim = 32
    batch, seq = 2, 8

    key = jax.random.PRNGKey(0)
    kx, kmu, kls = jax.random.split(key, 3)

    x = jax.random.normal(kx, (batch, seq, dim), dtype=jnp.float32)
    mu = 0.1 * jax.random.normal(kmu, (dim,), dtype=jnp.float32)
    log_sigma = 0.05 * jax.random.normal(kls, (dim,), dtype=jnp.float32)

    z, log_det = actnorm1_forward(x, mu, log_sigma)
    z = jax.block_until_ready(z)
    log_det = jax.block_until_ready(log_det)

    # Reference check against plain JAX (same math as the PyTorch forward).
    z_ref = x * jnp.exp(log_sigma) + mu
    ld_ref = jnp.sum(log_sigma)
    assert jnp.allclose(z, z_ref, atol=1e-5, rtol=1e-5)
    assert jnp.allclose(log_det, ld_ref, atol=1e-6, rtol=1e-6)

    # Also exercise a shape whose element count is NOT a multiple of
    # lcm(dim, 128) so the pad+slice lane-dense path is covered.
    x2 = jax.random.normal(kx, (3, 5, dim), dtype=jnp.float32)
    z2, _ = actnorm1_forward(x2, mu, log_sigma)
    z2 = jax.block_until_ready(z2)
    assert jnp.allclose(z2, x2 * jnp.exp(log_sigma) + mu, atol=1e-5, rtol=1e-5)

    print("KERNEL_OK")
</pallas_src>

<mosaic_0001>
module attributes {stable_mosaic.version = 11 : i64} {
  func.func @_actnorm_kernel(%arg0: i32, %arg1: memref<4x128xf32, #tpu.memory_space<vmem>>, %arg2: memref<1x128xf32, #tpu.memory_space<vmem>>, %arg3: memref<1x128xf32, #tpu.memory_space<vmem>>, %arg4: memref<4x128xf32, #tpu.memory_space<vmem>>) attributes {dimension_semantics = [#tpu.dimension_semantics<parallel>], iteration_bounds = array<i64: 1>, scalar_prefetch = 0 : i64, scratch_operands = 0 : i64, tpu.core_type = #tpu.core_type<tc>, window_params = [{transform_indices = @transform_0, window_bounds = array<i64: 4, 128>}, {pipeline_mode = #tpu.pipeline_mode<synchronous>, transform_indices = @transform_1, window_bounds = array<i64: 1, 128>}, {pipeline_mode = #tpu.pipeline_mode<synchronous>, transform_indices = @transform_2, window_bounds = array<i64: 1, 128>}, {transform_indices = @transform_3, window_bounds = array<i64: 4, 128>}]} {
    %c0 = arith.constant 0 : index
    %c0_0 = arith.constant 0 : index
    %0 = vector.load %arg1[%c0, %c0_0] : memref<4x128xf32, #tpu.memory_space<vmem>>, vector<4x128xf32>
    %c0_1 = arith.constant 0 : index
    %c0_2 = arith.constant 0 : index
    %1 = vector.load %arg2[%c0_1, %c0_2] : memref<1x128xf32, #tpu.memory_space<vmem>>, vector<1x128xf32>
    %2 = vector.broadcast %1 : vector<1x128xf32> to vector<4x128xf32>
    %3 = arith.mulf %0, %2 : vector<4x128xf32>
    %c0_3 = arith.constant 0 : index
    %c0_4 = arith.constant 0 : index
    %4 = vector.load %arg3[%c0_3, %c0_4] : memref<1x128xf32, #tpu.memory_space<vmem>>, vector<1x128xf32>
    %5 = vector.broadcast %4 : vector<1x128xf32> to vector<4x128xf32>
    %6 = arith.addf %3, %5 : vector<4x128xf32>
    %c0_5 = arith.constant 0 : index
    %c0_6 = arith.constant 0 : index
    %7 = vector.load %arg4[%c0_5, %c0_6] : memref<4x128xf32, #tpu.memory_space<vmem>>, vector<4x128xf32>
    tpu.vector_store %arg4[%c0_5, %c0_6], %6 {strides = array<i32>} : memref<4x128xf32, #tpu.memory_space<vmem>>, vector<4x128xf32>,
    return
  }
  func.func @transform_0(%arg0: i32) -> (i32, i32) {
    %c0_i32 = arith.constant 0 : i32
    %c0_i32_0 = arith.constant 0 : i32
    return %arg0, %c0_i32 : i32, i32
  }
  func.func @transform_1(%arg0: i32) -> (i32, i32) {
    %c0_i32 = arith.constant 0 : i32
    %c0_i32_0 = arith.constant 0 : i32
    %c0_i32_1 = arith.constant 0 : i32
    return %c0_i32, %c0_i32_0 : i32, i32
  }
  func.func @transform_2(%arg0: i32) -> (i32, i32) {
    %c0_i32 = arith.constant 0 : i32
    %c0_i32_0 = arith.constant 0 : i32
    %c0_i32_1 = arith.constant 0 : i32
    return %c0_i32, %c0_i32_0 : i32, i32
  }
  func.func @transform_3(%arg0: i32) -> (i32, i32) {
    %c0_i32 = arith.constant 0 : i32
    %c0_i32_0 = arith.constant 0 : i32
    return %arg0, %c0_i32 : i32, i32
  }
}

</mosaic_0001>

<llo_original>
// kernel: tpu_custom_call.1
$region0: #{tpu_custom_call.1}
  #allocation0 [shape = 'u32[]', space=smem, size = 0x4, offset = 0x4, fixed_abs, tag = 'smem constant byte address 0x4 - core index']
  #allocation1 [shape = 'u32[144,128]{1,0:T(1,128)}', space=vmem, size = 0x12000, scoped, tag = 'internal scratch']
  %s0 = inlined_call_operand.hbm [shape: f32[4,128], index: 0, kind: input, shape index: {}]
  %s1 = inlined_call_operand.vmem [shape: f32[1,128], index: 1, kind: input, shape index: {}]
  %s2 = inlined_call_operand.vmem [shape: f32[1,128], index: 2, kind: input, shape index: {}]
  %s3 = inlined_call_operand.hbm [shape: f32[4,128], index: 3, kind: output, shape index: {}]
  %s4 = sld [smem:[#allocation0]]
  $region26: #{tpu_custom_call.1} parent=0
    _
  %s6 = ssub.s32 1, %s4
  %s7 = scalar_select 0, %s6, %s4
  $region1: #{tpu_custom_call.1} parent=0
    #allocation2 [shape = 'u8[2048]{0}', space=vmem, size = 0x800, scoped, tag = 'input window, operand 0, single buffered']
    #allocation3 [shape = 's32[1]{0}', space=sflag, size = 0x4, scoped, tag = 'scoped memory for tpu_custom_call.1']
    #allocation4 [shape = 's32[1]{0}', space=sflag, size = 0x4, scoped, tag = 'scoped memory for tpu_custom_call.1']
    #allocation5 [shape = 'u8[2048]{0}', space=vmem, size = 0x800, scoped, tag = 'output window, operand 0, single buffered']
    %8 = vsyncpa [#allocation3], 0
    %9 = vsyncpa [#allocation4], 0
    // Predicated region
    $region2: #{tpu_custom_call.1} parent=1 // pred_check
      _
    $region3: #{tpu_custom_call.1} parent=1 // pred_check_branch
      %11 = sbr.rel (0) target = $region5
    $region4: #{tpu_custom_call.1} parent=1 // pred_region
      %s13 = ssub.s32 64, 64
      %14 = vsyncadd [#allocation3], %s13
      %s16 = sshll.u32 [#allocation2], 4
      %s17 = int_to_ptr.vmem [resolvable:$true] %s16
      %19 = dma.hbm_to_vmem [thread:$0]  %s0, 64, %s17, [#allocation3]
    $region5: #{tpu_custom_call.1} parent=1 // pred_fallthru
      _
    // Predicated region
    $region6: #{tpu_custom_call.1} parent=1 // pred_check
      _
    $region7: #{tpu_custom_call.1} parent=1 // pred_check_branch
      %21 = sbr.rel (0) target = $region9
    $region8: #{tpu_custom_call.1} parent=1 // pred_region
      _
    $region9: #{tpu_custom_call.1} parent=1 // pred_fallthru
      _
    // Predicated region
    $region10: #{tpu_custom_call.1} parent=1 // pred_check
      _
    $region11: #{tpu_custom_call.1} parent=1 // pred_check_branch
      %23 = sbr.rel (0) target = $region13
    $region12: #{tpu_custom_call.1} parent=1 // pred_region
      _
    $region13: #{tpu_custom_call.1} parent=1 // pred_fallthru
      _
    // Predicated region
    $region14: #{tpu_custom_call.1} parent=1 // pred_check
      _
    $region15: #{tpu_custom_call.1} parent=1 // pred_check_branch
      %25 = sbr.rel (0) target = $region17
    $region16: #{tpu_custom_call.1} parent=1 // pred_region
      %26 = dma.done [#allocation3], 64
    $region17: #{tpu_custom_call.1} parent=1 // pred_fallthru
      _
    %v27 = vld [vmem:[#allocation2] sm:$0xf]
    %v28 = vld [vmem:[%s1] sm:$0x1]
    %v30 = vlaneseq
    %v31 = vshrl.u32 %v30, 7
    %v32 = vsub.s32 0, %v31
    %v33 = vrot.slane %v28, %v32
    %v35 = vmul.f32 %v27, %v33
    %v36 = vld [vmem:[%s2] sm:$0x1]
    %v38 = vlaneseq
    %v39 = vshrl.u32 %v38, 7
    %v40 = vsub.s32 0, %v39
    %v41 = vrot.slane %v36, %v40
    %v43 = vadd.f32 %v35, %v41
    %44 = vst [vmem:[#allocation5] sm:$0xf] %v43
    // Predicated region
    $region18: #{tpu_custom_call.1} parent=1 // pred_check
      _
    $region19: #{tpu_custom_call.1} parent=1 // pred_check_branch
      %46 = sbr.rel (0) target = $region21
    $region20: #{tpu_custom_call.1} parent=1 // pred_region
      %s48 = ssub.s32 64, 64
      %49 = vsyncadd [#allocation4], %s48
      %s51 = sshll.u32 [#allocation5], 4
      %s52 = int_to_ptr.vmem [resolvable:$true] %s51
      %54 = dma.vmem_to_hbm [thread:$0]  %s52, 64, %s3, [#allocation4]
    $region21: #{tpu_custom_call.1} parent=1 // pred_fallthru
      _
    // Predicated region
    $region22: #{tpu_custom_call.1} parent=1 // pred_check
      _
    $region23: #{tpu_custom_call.1} parent=1 // pred_check_branch
      %56 = sbr.rel (0) target = $region25
    $region24: #{tpu_custom_call.1} parent=1 // pred_region
      %57 = dma.done [#allocation4], 64
    $region25: #{tpu_custom_call.1} parent=1 // pred_fallthru
      _
    %58 = vsyncpa [#allocation3], 1
    %59 = vsyncpa [#allocation4], 1

</llo_original>
